<compile_context>
chip_gen: v5e
topology: v5e:2x2
jax: 0.10.0
libtpu: 0.0.40
codegen_flags: <defaults>
</compile_context>

<pallas_src>
import functools

import jax
import jax.numpy as jnp
from jax.experimental import pallas as pl
from jax.experimental.pallas import tpu as pltpu


def _normalization_kernel(scale_ref, bias_ref, img_ref, out_ref, *, block_r):
    # scale_ref / bias_ref: grid-invariant (padded_rows, 1) f32 VMEM blocks
    #   holding per-row 1/std and -mean/std (fetched once, sliced per step).
    # img_ref / out_ref   : (block_r, block_l) tiles of the flattened image.
    r0 = pl.multiple_of(pl.program_id(0) * block_r, block_r)
    scale = scale_ref[pl.ds(r0, block_r), :]
    bias = bias_ref[pl.ds(r0, block_r), :]
    x = img_ref[...].astype(jnp.float32)
    out_ref[...] = (x * scale + bias).astype(out_ref.dtype)


def _choose_split(rows0, lane0):
    """Split factor S: view each channel plane as S rows of lane0//S so that
    rows0*S is a multiple of 8 (sublane dense) while lane0//S stays a
    multiple of 128 (lane dense)."""
    if rows0 % 8 == 0 or lane0 % 128 != 0:
        return 1
    for s in (2, 4, 8, 16, 32, 64):  # prefer exact sublane density
        if lane0 % s == 0 and (lane0 // s) % 128 == 0 and (rows0 * s) % 8 == 0:
            return s
    for s in (2, 4, 8, 16, 32, 64):  # else at least fill the 8 sublanes
        if lane0 % s == 0 and (lane0 // s) % 128 == 0 and rows0 * s >= 8:
            return s
    return 1


def _pick_block(rows, lane):
    """Lane-dense ~4 MiB f32 blocks; in+out double buffers ~16 MiB, safely
    inside the explicit 32 MiB scoped-VMEM budget on v5e/v6e/v7x."""
    MAX_LANE = 32768             # lane-block cap, multiple of 128
    TARGET_ELEMS = 1024 * 1024   # ~4 MiB of f32 per block

    block_l = lane if lane <= MAX_LANE else MAX_LANE

    r_target = max(1, TARGET_ELEMS // block_l)
    if rows <= r_target:
        block_r = rows
    else:
        block_r = min(rows, max(8, (r_target // 8) * 8))

    # v7x megacore: if everything fits one block but the problem is >= ~1 MiB,
    # split once along a "parallel" axis so both TensorCores get work.
    if (pl.cdiv(rows, block_r) * pl.cdiv(lane, block_l) == 1
            and rows * lane >= 256 * 1024):
        if rows >= 16 and rows % 16 == 0:
            block_r = rows // 2
        elif lane >= 256 and lane % 256 == 0:
            block_l = lane // 2
        elif rows >= 16:
            block_r = max(8, ((rows // 2) // 8) * 8)
        else:
            block_l = max(128, ((lane // 2) // 128) * 128)
    return block_r, block_l


def normalization_forward(img, mean, std, out_dtype=None):
    """(img - mean[:, None, None]) / std[:, None, None] for NCHW `img`.

    Computed as img * (1/std) + (-mean/std) in f32 (ulp-level difference from
    the two-op form). Integer inputs are promoted to float32 output.
    """
    N, C, H, W = img.shape
    assert mean.shape == (C,) and std.shape == (C,)

    if out_dtype is None:
        out_dtype = img.dtype if jnp.issubdtype(img.dtype, jnp.floating) else jnp.float32

    rows0, lane0 = N * C, H * W
    split = _choose_split(rows0, lane0)
    rows, lane = rows0 * split, lane0 // split

    x2d = img.reshape(rows, lane)

    # Exact f32 per-row affine parameters (row r <-> channel (r // split) % C).
    inv_std = 1.0 / std.astype(jnp.float32)
    neg_mean_over_std = -mean.astype(jnp.float32) * inv_std
    row_scale = jnp.repeat(jnp.tile(inv_std, N), split).reshape(rows, 1)
    row_bias = jnp.repeat(jnp.tile(neg_mean_over_std, N), split).reshape(rows, 1)

    block_r, block_l = _pick_block(rows, lane)
    grid = (pl.cdiv(rows, block_r), pl.cdiv(lane, block_l))

    # Pad params so the in-kernel pl.ds slice never runs past the array on a
    # partial last row-block (pad values are never written to the output).
    padded_rows = grid[0] * block_r
    if padded_rows != rows:
        pad = padded_rows - rows
        row_scale = jnp.concatenate([row_scale, jnp.ones((pad, 1), jnp.float32)], axis=0)
        row_bias = jnp.concatenate([row_bias, jnp.zeros((pad, 1), jnp.float32)], axis=0)

    in_bytes = rows * lane * jnp.dtype(img.dtype).itemsize
    out_bytes = rows * lane * jnp.dtype(out_dtype).itemsize
    cost = pl.CostEstimate(
        flops=2 * rows * lane,
        transcendentals=0,
        bytes_accessed=in_bytes + out_bytes + 2 * padded_rows * 4,
    )

    out2d = pl.pallas_call(
        functools.partial(_normalization_kernel, block_r=block_r),
        out_shape=jax.ShapeDtypeStruct((rows, lane), out_dtype),
        grid_spec=pltpu.PrefetchScalarGridSpec(
            num_scalar_prefetch=0,
            grid=grid,
            in_specs=[
                pl.BlockSpec((padded_rows, 1), lambda i, j: (0, 0)),    # scale (grid-invariant)
                pl.BlockSpec((padded_rows, 1), lambda i, j: (0, 0)),    # bias  (grid-invariant)
                pl.BlockSpec((block_r, block_l), lambda i, j: (i, j)),  # image tile
            ],
            out_specs=pl.BlockSpec((block_r, block_l), lambda i, j: (i, j)),
        ),
        compiler_params=pltpu.CompilerParams(
            dimension_semantics=("parallel", "parallel"),
            vmem_limit_bytes=32 * 1024 * 1024,
        ),
        cost_estimate=cost,
    )(row_scale, row_bias, x2d)

    return out2d.reshape(N, C, H, W)


if __name__ == "__main__":
    key = jax.random.PRNGKey(0)
    k_img, k_mean, k_std = jax.random.split(key, 3)

    N, C, H, W = 2, 4, 16, 16
    img = jax.random.uniform(k_img, (N, C, H, W), dtype=jnp.float32)
    # Deterministic synthetic "dataset statistics" (shape (C,), std > 0).
    mean = jax.random.uniform(k_mean, (C,), dtype=jnp.float32)
    std = jnp.abs(jax.random.normal(k_std, (C,), dtype=jnp.float32)) + 0.5

    out = normalization_forward(img, mean, std)
    out = jax.block_until_ready(out)

    # Reference (plain JAX, mirrors the PyTorch broadcasting semantics).
    ref = (img - mean[:, None, None]) / std[:, None, None]
    assert out.shape == (N, C, H, W)
    # Kernel uses x*(1/std) + (-mean/std); differs from (x-mean)/std only at
    # ulp level -> slightly relaxed tolerance.
    assert jnp.allclose(out, ref, atol=1e-5, rtol=1e-5)

    print("KERNEL_OK")
</pallas_src>

<mosaic_0001>
module attributes {stable_mosaic.version = 11 : i64} {
  func.func @_normalization_kernel(%arg0: i32, %arg1: i32, %arg2: memref<8x1xf32, #tpu.memory_space<vmem>>, %arg3: memref<8x1xf32, #tpu.memory_space<vmem>>, %arg4: memref<8x256xf32, #tpu.memory_space<vmem>>, %arg5: memref<8x256xf32, #tpu.memory_space<vmem>>) attributes {dimension_semantics = [#tpu.dimension_semantics<parallel>, #tpu.dimension_semantics<parallel>], iteration_bounds = array<i64: 1, 1>, scalar_prefetch = 0 : i64, scratch_operands = 0 : i64, tpu.core_type = #tpu.core_type<tc>, window_params = [{pipeline_mode = #tpu.pipeline_mode<synchronous>, transform_indices = @transform_0, window_bounds = array<i64: 8, 1>}, {pipeline_mode = #tpu.pipeline_mode<synchronous>, transform_indices = @transform_1, window_bounds = array<i64: 8, 1>}, {transform_indices = @transform_2, window_bounds = array<i64: 8, 256>}, {transform_indices = @transform_3, window_bounds = array<i64: 8, 256>}]} {
    %c8_i32 = arith.constant 8 : i32
    %0 = arith.muli %arg0, %c8_i32 : i32
    %1 = tpu.assume_multiple %0, 8 : i32
    %2 = arith.index_cast %1 : i32 to index
    %c0 = arith.constant 0 : index
    %3 = vector.load %arg2[%2, %c0] : memref<8x1xf32, #tpu.memory_space<vmem>>, vector<8x1xf32>
    %4 = arith.index_cast %1 : i32 to index
    %c0_0 = arith.constant 0 : index
    %5 = vector.load %arg3[%4, %c0_0] : memref<8x1xf32, #tpu.memory_space<vmem>>, vector<8x1xf32>
    %c0_1 = arith.constant 0 : index
    %c0_2 = arith.constant 0 : index
    %6 = vector.load %arg4[%c0_1, %c0_2] : memref<8x256xf32, #tpu.memory_space<vmem>>, vector<8x256xf32>
    %7 = vector.broadcast %3 : vector<8x1xf32> to vector<8x256xf32>
    %8 = arith.mulf %6, %7 : vector<8x256xf32>
    %9 = vector.broadcast %5 : vector<8x1xf32> to vector<8x256xf32>
    %10 = arith.addf %8, %9 : vector<8x256xf32>
    %c0_3 = arith.constant 0 : index
    %c0_4 = arith.constant 0 : index
    %11 = vector.load %arg5[%c0_3, %c0_4] : memref<8x256xf32, #tpu.memory_space<vmem>>, vector<8x256xf32>
    tpu.vector_store %arg5[%c0_3, %c0_4], %10 {strides = array<i32>} : memref<8x256xf32, #tpu.memory_space<vmem>>, vector<8x256xf32>,
    return
  }
  func.func @transform_0(%arg0: i32, %arg1: i32) -> (i32, i32) {
    %c0_i32 = arith.constant 0 : i32
    %c0_i32_0 = arith.constant 0 : i32
    %c0_i32_1 = arith.constant 0 : i32
    return %c0_i32, %c0_i32_0 : i32, i32
  }
  func.func @transform_1(%arg0: i32, %arg1: i32) -> (i32, i32) {
    %c0_i32 = arith.constant 0 : i32
    %c0_i32_0 = arith.constant 0 : i32
    %c0_i32_1 = arith.constant 0 : i32
    return %c0_i32, %c0_i32_0 : i32, i32
  }
  func.func @transform_2(%arg0: i32, %arg1: i32) -> (i32, i32) {
    %c0_i32 = arith.constant 0 : i32
    return %arg0, %arg1 : i32, i32
  }
  func.func @transform_3(%arg0: i32, %arg1: i32) -> (i32, i32) {
    %c0_i32 = arith.constant 0 : i32
    return %arg0, %arg1 : i32, i32
  }
}

</mosaic_0001>

<llo_original>
// kernel: tpu_custom_call.1
$region0: #{tpu_custom_call.1}
  #allocation0 [shape = 'u32[]', space=smem, size = 0x4, offset = 0x4, fixed_abs, tag = 'smem constant byte address 0x4 - core index']
  #allocation1 [shape = 'u32[72,128]{1,0:T(1,128)}', space=vmem, size = 0x9000, scoped, tag = 'internal scratch']
  %s0 = inlined_call_operand.vmem [shape: f32[8,1], index: 0, kind: input, shape index: {}]
  %s1 = inlined_call_operand.vmem [shape: f32[8,1], index: 1, kind: input, shape index: {}]
  %s2 = inlined_call_operand.vmem [shape: f32[8,256], index: 2, kind: input, shape index: {}]
  %s3 = inlined_call_operand.hbm [shape: f32[8,256], index: 3, kind: output, shape index: {}]
  %s4 = sld [smem:[#allocation0]]
  $region22: #{tpu_custom_call.1} parent=0
    _
  %s6 = ssub.s32 1, %s4
  %s7 = scalar_select 0, %s6, %s4
  $region1: #{tpu_custom_call.1} parent=0
    #allocation2 [shape = 'u8[8192]{0}', space=vmem, size = 0x2000, scoped, tag = 'output window, operand 0, single buffered']
    #allocation3 [shape = 's32[1]{0}', space=sflag, size = 0x4, scoped, tag = 'scoped memory for tpu_custom_call.1']
    %8 = vsyncpa [#allocation3], 0
    // Predicated region
    $region2: #{tpu_custom_call.1} parent=1 // pred_check
      _
    $region3: #{tpu_custom_call.1} parent=1 // pred_check_branch
      %10 = sbr.rel (0) target = $region5
    $region4: #{tpu_custom_call.1} parent=1 // pred_region
      _
    $region5: #{tpu_custom_call.1} parent=1 // pred_fallthru
      _
    // Predicated region
    $region6: #{tpu_custom_call.1} parent=1 // pred_check
      _
    $region7: #{tpu_custom_call.1} parent=1 // pred_check_branch
      %12 = sbr.rel (0) target = $region9
    $region8: #{tpu_custom_call.1} parent=1 // pred_region
      _
    $region9: #{tpu_custom_call.1} parent=1 // pred_fallthru
      _
    // Predicated region
    $region10: #{tpu_custom_call.1} parent=1 // pred_check
      _
    $region11: #{tpu_custom_call.1} parent=1 // pred_check_branch
      %14 = sbr.rel (0) target = $region13
    $region12: #{tpu_custom_call.1} parent=1 // pred_region
      _
    $region13: #{tpu_custom_call.1} parent=1 // pred_fallthru
      _
    %s15 = smul.u32 0, 8
    %s16 = scalar_lea.vmem %s0, %s15
    %v17 = vld [vmem:[%s16] sm:$0xff]
    %s18 = scalar_lea.vmem %s1, %s15
    %v19 = vld [vmem:[%s18] sm:$0xff]
    %v20 = vld [vmem:[%s2] sm:$0xff]
    %v21 = vld [vmem:[%s2 + $0x8] sm:$0xff]
    %23 = vset.pattern.permute.xlu0 0
    %24 = vperm.xlu0 %23, %v17
    %v25 = vpop.permute.xlu0 %24
    %v27 = vmul.f32 %v20, %v25
    %v28 = vmul.f32 %v21, %v25
    %30 = vset.pattern.permute.xlu0 0
    %31 = vperm.xlu0 %30, %v19
    %v32 = vpop.permute.xlu0 %31
    %v34 = vadd.f32 %v27, %v32
    %v35 = vadd.f32 %v28, %v32
    %36 = vst [vmem:[#allocation2] sm:$0xff] %v34
    %37 = vst [vmem:[#allocation2 + $0x8] sm:$0xff] %v35
    // Predicated region
    $region14: #{tpu_custom_call.1} parent=1 // pred_check
      _
    $region15: #{tpu_custom_call.1} parent=1 // pred_check_branch
      %39 = sbr.rel (0) target = $region17
    $region16: #{tpu_custom_call.1} parent=1 // pred_region
      %41 = vsyncadd [#allocation3], 0
      %s43 = sshll.u32 [#allocation2], 4
      %s44 = int_to_ptr.vmem [resolvable:$true] %s43
      %s45 = sshll.u32 %s3, 4
      %s46 = int_to_ptr.hbm [resolvable:$true] %s45
      %48 = dma.vmem_to_hbm [thread:$0]  %s44, 256, %s46, [#allocation3]
    $region17: #{tpu_custom_call.1} parent=1 // pred_fallthru
      _
    // Predicated region
    $region18: #{tpu_custom_call.1} parent=1 // pred_check
      _
    $region19: #{tpu_custom_call.1} parent=1 // pred_check_branch
      %50 = sbr.rel (0) target = $region21
    $region20: #{tpu_custom_call.1} parent=1 // pred_region
      %52 = dma.done [#allocation3], 256
    $region21: #{tpu_custom_call.1} parent=1 // pred_fallthru
      _
    %53 = vsyncpa [#allocation3], 1

</llo_original>
